<compile_context>
chip_gen: v7x
topology: tpu7x:2x2x1
jax: 0.10.0
libtpu: 0.0.40
codegen_flags: <defaults>
</compile_context>

<pallas_src>
import jax
import jax.numpy as jnp
from jax.experimental import pallas as pl
from jax.experimental.pallas import tpu as pltpu


def _round_up(x, m):
    return (x + m - 1) // m * m


def gcn_kernel(adj_ref, feat_ref, dinv_ref, w_ref, b_ref, out_ref):
    """Gb graphs per grid step.

    adj_ref : [Gb, Np, Np] bf16  (A, no self loops; +I folded in algebraically)
    feat_ref: [Gb, Np, F ] bf16
    dinv_ref: [Gb, Np, 1 ] f32   (d^{-1/2} of A+I, precomputed in wrapper)
    w_ref   : [F , Op]     bf16  (pre-transposed nn.Linear weight, zero-padded)
    b_ref   : [1 , Op]     f32
    out_ref : [Gb, Np, Op] f32
    """
    gb, n_p, f = feat_ref.shape
    o_p = w_ref.shape[1]

    # One fused X @ W for every graph in this chunk: [Gb*Np, F] @ [F, Op].
    # n_p is a multiple of 16, so this reshape is layout-free for bf16.
    feats = feat_ref[...].reshape(gb * n_p, f)
    xw = jnp.dot(feats, w_ref[...], preferred_element_type=jnp.float32)
    xw = xw.reshape(gb, n_p, o_p)                      # [Gb, Np, Op] f32

    dinv = dinv_ref[...]                               # [Gb, Np, 1] f32
    z = dinv * xw                                      # D^{-1/2} X W

    # Per-graph A @ z, batched on the MXU (bf16 inputs, f32 accumulation).
    az = jnp.einsum('gij,gjo->gio', adj_ref[...], z.astype(jnp.bfloat16),
                    preferred_element_type=jnp.float32)

    tf = dinv * (az + z)                               # D^{-1/2}(A+I)D^{-1/2} X W
    out_ref[...] = jnp.maximum(tf + b_ref[...], 0.0).astype(out_ref.dtype)


def gcn_layer_batched(features, adjacency, weight, bias, *, graphs_per_step=None):
    """features: [G, N, F], adjacency: [G, N, N], weight: [F, O], bias: [O]."""
    g, n, f = features.shape
    o = weight.shape[1]

    n_p = _round_up(n, 16)     # bf16 packs 16 sublanes per vreg
    o_p = _round_up(o, 128)    # lane-dense output / intermediates

    if graphs_per_step is None:
        # Default to exactly two grid steps (when G > 1): amortizes the ~0.35us
        # per-step overhead across Gb graphs while keeping an even, >=2 grid so
        # both v7x TensorCores get work (no-op on single-TC v5e/v6e).
        graphs_per_step = max(1, -(-g // 2))
    gb = graphs_per_step
    g_p = _round_up(g, gb)
    n_steps = g_p // gb

    # d^{-1/2} of (A + I), precomputed in plain XLA on the f32 adjacency.
    # degree >= 1 by construction, so no inf guard is needed.  Padded rows get
    # d^{-1/2} = 0; they are sliced off below anyway.
    degree = jnp.sum(adjacency.astype(jnp.float32), axis=-1, keepdims=True) + 1.0
    d_inv_sqrt = jax.lax.rsqrt(degree)                              # [G, N, 1]
    d_inv_sqrt = jnp.pad(d_inv_sqrt, ((0, g_p - g), (0, n_p - n), (0, 0)))

    # Zero-pad.  Padded nodes/graphs contribute nothing and padded output
    # columns stay exactly 0; everything is sliced off below.
    adj_p = jnp.pad(adjacency.astype(jnp.bfloat16),
                    ((0, g_p - g), (0, n_p - n), (0, n_p - n)))
    feat_p = jnp.pad(features.astype(jnp.bfloat16),
                     ((0, g_p - g), (0, n_p - n), (0, 0)))
    w_p = jnp.pad(weight.astype(jnp.bfloat16), ((0, 0), (0, o_p - o)))
    b_p = jnp.pad(bias.astype(jnp.float32), (0, o_p - o)).reshape(1, o_p)

    out_p = pl.pallas_call(
        gcn_kernel,
        out_shape=jax.ShapeDtypeStruct((g_p, n_p, o_p), jnp.float32),
        grid_spec=pltpu.PrefetchScalarGridSpec(
            num_scalar_prefetch=0,
            grid=(n_steps,),
            in_specs=[
                pl.BlockSpec((gb, n_p, n_p), lambda i: (i, 0, 0)),  # adjacency chunk
                pl.BlockSpec((gb, n_p, f), lambda i: (i, 0, 0)),    # features chunk
                pl.BlockSpec((gb, n_p, 1), lambda i: (i, 0, 0)),    # d^{-1/2} chunk
                pl.BlockSpec((f, o_p), lambda i: (0, 0)),           # weight (shared)
                pl.BlockSpec((1, o_p), lambda i: (0, 0)),           # bias (shared)
            ],
            out_specs=pl.BlockSpec((gb, n_p, o_p), lambda i: (i, 0, 0)),
        ),
        compiler_params=pltpu.CompilerParams(
            dimension_semantics=("parallel",)),   # graph chunks split across TCs on v7x
    )(adj_p, feat_p, d_inv_sqrt, w_p, b_p)

    return out_p[:g, :n, :o]


def gcn_layer(features, adjacency, weight, bias):
    """Single graph: features [N, F], adjacency [N, N], weight [F, O], bias [O]."""
    return gcn_layer_batched(features[None], adjacency[None], weight, bias)[0]


def reference_gcn(features, adjacency, weight, bias):
    n = adjacency.shape[0]
    a_hat = adjacency + jnp.eye(n, dtype=adjacency.dtype)
    degree = jnp.sum(a_hat, axis=1)
    dsi = degree ** -0.5
    dsi = jnp.where(jnp.isinf(dsi), 0.0, dsi)
    sym = jnp.diag(dsi) @ a_hat @ jnp.diag(dsi)
    tf = sym @ features
    return jax.nn.relu(tf @ weight + bias)


if __name__ == "__main__":
    G = 4            # graphs, chunked 2-per-step -> grid=(2,)
    N = 8            # nodes per graph
    INPUT_DIM = 32
    OUTPUT_DIM = 16

    key = jax.random.PRNGKey(0)
    k_feat, k_adj, k_w, k_b = jax.random.split(key, 4)

    features = jax.random.normal(k_feat, (G, N, INPUT_DIM), dtype=jnp.float32)

    # Symmetric 0/1 adjacency without self loops, per graph.
    raw = jax.random.uniform(k_adj, (G, N, N))
    adj = (raw > 0.6).astype(jnp.float32)
    adj = jnp.triu(adj, 1)
    adj = adj + jnp.swapaxes(adj, -1, -2)

    # nn.Linear(input_dim, output_dim) params; weight stored pre-transposed [in, out].
    weight = (jax.random.normal(k_w, (INPUT_DIM, OUTPUT_DIM), dtype=jnp.float32)
              * (1.0 / jnp.sqrt(INPUT_DIM)))
    bias = jax.random.normal(k_b, (OUTPUT_DIM,), dtype=jnp.float32) * 0.1

    out = jax.block_until_ready(gcn_layer_batched(features, adj, weight, bias))
    assert out.shape == (G, N, OUTPUT_DIM)

    ref = jnp.stack([reference_gcn(features[i], adj[i], weight, bias)
                     for i in range(G)])
    # Tolerance loosened vs. a pure-f32 version because matmul inputs are bf16
    # (accumulation stays f32 on the MXU); exact for this 0/1 adjacency only.
    assert jnp.allclose(out, ref, atol=5e-2, rtol=5e-2), "batched mismatch vs reference"

    out1 = jax.block_until_ready(gcn_layer(features[0], adj[0], weight, bias))
    assert jnp.allclose(out1, ref[0], atol=5e-2, rtol=5e-2), "single-graph mismatch"

    print("KERNEL_OK")
</pallas_src>

<mosaic_0001>
module attributes {stable_mosaic.version = 11 : i64} {
  func.func @gcn_kernel(%arg0: i32, %arg1: memref<2x16x16xbf16, #tpu.memory_space<vmem>>, %arg2: memref<2x16x32xbf16, #tpu.memory_space<vmem>>, %arg3: memref<2x16x1xf32, #tpu.memory_space<vmem>>, %arg4: memref<32x128xbf16, #tpu.memory_space<vmem>>, %arg5: memref<1x128xf32, #tpu.memory_space<vmem>>, %arg6: memref<2x16x128xf32, #tpu.memory_space<vmem>>) attributes {dimension_semantics = [#tpu.dimension_semantics<parallel>], iteration_bounds = array<i64: 2>, scalar_prefetch = 0 : i64, scratch_operands = 0 : i64, tpu.core_type = #tpu.core_type<tc>, window_params = [{transform_indices = @transform_0, window_bounds = array<i64: 2, 16, 16>}, {transform_indices = @transform_1, window_bounds = array<i64: 2, 16, 32>}, {transform_indices = @transform_2, window_bounds = array<i64: 2, 16, 1>}, {pipeline_mode = #tpu.pipeline_mode<synchronous>, transform_indices = @transform_3, window_bounds = array<i64: 32, 128>}, {pipeline_mode = #tpu.pipeline_mode<synchronous>, transform_indices = @transform_4, window_bounds = array<i64: 1, 128>}, {transform_indices = @transform_5, window_bounds = array<i64: 2, 16, 128>}]} {
    %c0 = arith.constant 0 : index
    %c0_0 = arith.constant 0 : index
    %c0_1 = arith.constant 0 : index
    %0 = vector.load %arg2[%c0, %c0_0, %c0_1] : memref<2x16x32xbf16, #tpu.memory_space<vmem>>, vector<2x16x32xbf16>
    %1 = vector.shape_cast %0 : vector<2x16x32xbf16> to vector<32x32xbf16>
    %c0_2 = arith.constant 0 : index
    %c0_3 = arith.constant 0 : index
    %2 = vector.load %arg4[%c0_2, %c0_3] : memref<32x128xbf16, #tpu.memory_space<vmem>>, vector<32x128xbf16>
    %cst = arith.constant dense<0.000000e+00> : vector<32x128xf32>
    %3 = tpu.matmul %1, %2, %cst {dimension_numbers = #tpu.dot_dimension_numbers<[1], [0], [0], [1], [0, 0, 1, 1], [], []>} : vector<32x32xbf16>, vector<32x128xbf16>, vector<32x128xf32> -> vector<32x128xf32>
    %4 = vector.shape_cast %3 : vector<32x128xf32> to vector<2x16x128xf32>
    %c0_4 = arith.constant 0 : index
    %c0_5 = arith.constant 0 : index
    %c0_6 = arith.constant 0 : index
    %5 = vector.load %arg3[%c0_4, %c0_5, %c0_6] : memref<2x16x1xf32, #tpu.memory_space<vmem>>, vector<2x16x1xf32>
    %6 = vector.broadcast %5 : vector<2x16x1xf32> to vector<2x16x128xf32>
    %7 = arith.mulf %6, %4 : vector<2x16x128xf32>
    %c0_7 = arith.constant 0 : index
    %c0_8 = arith.constant 0 : index
    %c0_9 = arith.constant 0 : index
    %8 = vector.load %arg1[%c0_7, %c0_8, %c0_9] : memref<2x16x16xbf16, #tpu.memory_space<vmem>>, vector<2x16x16xbf16>
    %9 = arith.truncf %7 : vector<2x16x128xf32> to vector<2x16x128xbf16>
    "tpu.trace_start"() <{level = 10 : i32, message = "gij,gjo->gio"}> : () -> ()
    %cst_10 = arith.constant dense<0.000000e+00> : vector<2x16x128xf32>
    %10 = tpu.matmul %8, %9, %cst_10 {dimension_numbers = #tpu.dot_dimension_numbers<[2], [1], [1], [2], [0, 0, 0, 1, 1, 2], [0], [0]>} : vector<2x16x16xbf16>, vector<2x16x128xbf16>, vector<2x16x128xf32> -> vector<2x16x128xf32>
    "tpu.trace_stop"() : () -> ()
    %11 = arith.addf %10, %7 : vector<2x16x128xf32>
    %12 = vector.broadcast %5 : vector<2x16x1xf32> to vector<2x16x128xf32>
    %13 = arith.mulf %12, %11 : vector<2x16x128xf32>
    %c0_11 = arith.constant 0 : index
    %c0_12 = arith.constant 0 : index
    %14 = vector.load %arg5[%c0_11, %c0_12] : memref<1x128xf32, #tpu.memory_space<vmem>>, vector<1x128xf32>
    %15 = vector.shape_cast %14 : vector<1x128xf32> to vector<1x1x128xf32>
    %16 = vector.broadcast %15 : vector<1x1x128xf32> to vector<2x16x128xf32>
    %17 = arith.addf %13, %16 : vector<2x16x128xf32>
    %cst_13 = arith.constant 0.000000e+00 : f32
    %18 = vector.broadcast %cst_13 : f32 to vector<2x16x128xf32>
    %19 = arith.maximumf %17, %18 : vector<2x16x128xf32>
    %c0_14 = arith.constant 0 : index
    %c0_15 = arith.constant 0 : index
    %c0_16 = arith.constant 0 : index
    %20 = vector.load %arg6[%c0_14, %c0_15, %c0_16] : memref<2x16x128xf32, #tpu.memory_space<vmem>>, vector<2x16x128xf32>
    tpu.vector_store %arg6[%c0_14, %c0_15, %c0_16], %19 {strides = array<i32>} : memref<2x16x128xf32, #tpu.memory_space<vmem>>, vector<2x16x128xf32>,
    return
  }
  func.func @transform_0(%arg0: i32) -> (i32, i32, i32) {
    %c0_i32 = arith.constant 0 : i32
    %c0_i32_0 = arith.constant 0 : i32
    %c0_i32_1 = arith.constant 0 : i32
    return %arg0, %c0_i32, %c0_i32_0 : i32, i32, i32
  }
  func.func @transform_1(%arg0: i32) -> (i32, i32, i32) {
    %c0_i32 = arith.constant 0 : i32
    %c0_i32_0 = arith.constant 0 : i32
    %c0_i32_1 = arith.constant 0 : i32
    return %arg0, %c0_i32, %c0_i32_0 : i32, i32, i32
  }
  func.func @transform_2(%arg0: i32) -> (i32, i32, i32) {
    %c0_i32 = arith.constant 0 : i32
    %c0_i32_0 = arith.constant 0 : i32
    %c0_i32_1 = arith.constant 0 : i32
    return %arg0, %c0_i32, %c0_i32_0 : i32, i32, i32
  }
  func.func @transform_3(%arg0: i32) -> (i32, i32) {
    %c0_i32 = arith.constant 0 : i32
    %c0_i32_0 = arith.constant 0 : i32
    %c0_i32_1 = arith.constant 0 : i32
    return %c0_i32, %c0_i32_0 : i32, i32
  }
  func.func @transform_4(%arg0: i32) -> (i32, i32) {
    %c0_i32 = arith.constant 0 : i32
    %c0_i32_0 = arith.constant 0 : i32
    %c0_i32_1 = arith.constant 0 : i32
    return %c0_i32, %c0_i32_0 : i32, i32
  }
  func.func @transform_5(%arg0: i32) -> (i32, i32, i32) {
    %c0_i32 = arith.constant 0 : i32
    %c0_i32_0 = arith.constant 0 : i32
    %c0_i32_1 = arith.constant 0 : i32
    return %arg0, %c0_i32, %c0_i32_0 : i32, i32, i32
  }
}

</mosaic_0001>

<llo_original>
// kernel: tpu_custom_call.1
$region0: #{tpu_custom_call.1}
  #allocation0 [shape = 'u32[]', space=smem, size = 0x4, offset = 0x4, fixed_abs, tag = 'smem constant byte address 0x4 - core index']
  #allocation1 [shape = 'u32[144,128]{1,0:T(1,128)}', space=vmem, size = 0x12000, scoped, tag = 'internal scratch']
  %s0 = inlined_call_operand.vmem [shape: bf16[4,16,16], index: 0, kind: input, shape index: {}]
  %s1 = inlined_call_operand.vmem [shape: bf16[4,16,32], index: 1, kind: input, shape index: {}]
  %s2 = inlined_call_operand.vmem [shape: f32[4,16,1], index: 2, kind: input, shape index: {}]
  %s3 = inlined_call_operand.hbm [shape: bf16[32,128], index: 3, kind: input, shape index: {}]
  %s4 = inlined_call_operand.vmem [shape: f32[1,128], index: 4, kind: input, shape index: {}]
  %s5 = inlined_call_operand.hbm [shape: f32[4,16,128], index: 5, kind: output, shape index: {}]
  %s6 = sld [smem:[#allocation0]]
  $region57: #{tpu_custom_call.1} parent=0
    _
  %s8 = ssub.s32 1, %s6
  %s9 = scalar_select 0, %s8, %s6
  $region1: #{tpu_custom_call.1} parent=0
    #allocation2 [shape = 'u8[8192]{0}', space=vmem, size = 0x2000, scoped, tag = 'input window, operand 3, single buffered']
    #allocation3 [shape = 's32[2]{0}', space=sflag, size = 0x8, scoped, tag = 'scoped memory for tpu_custom_call.1']
    #allocation4 [shape = 's32[2]{0}', space=sflag, size = 0x8, scoped, tag = 'scoped memory for tpu_custom_call.1']
    #allocation5 [shape = 'u8[32768]{0}', space=vmem, size = 0x8000, scoped, tag = 'output window, operand 0']
    %10 = vsyncpa [#allocation3], 0
    %11 = vsyncpa [#allocation4], 0
    %s12 = scalar_lea.sflag [#allocation4], 1
    %13 = vsyncpa %s12, 0
    loop: start=0, step=1, limit=4
    $region2: #{tpu_custom_call.1} parent=1 // loop_pre_header
      _
    $region3: #{tpu_custom_call.1} parent=1 // loop_header
      %s15 = sphi 0, %s19
      %p16 = scmp.ge.s32.totalorder %s15, 4
      %s25 = sphi 0, %s27
      %s28 = sphi 0, %s25
      %s29 = sphi 0, %s28
      %s45 = sphi 0, %s29
      %s51 = sphi 0, %s53
      %s54 = sphi 0, %s51
      %s55 = sphi 0, %s54
      %s71 = sphi 0, %s55
      %s77 = sphi 0, %s79
      %s80 = sphi 0, %s77
      %s81 = sphi 0, %s80
      %s97 = sphi 0, %s81
      %s101 = sphi 0, %s101
      %s103 = sphi 0, %s101
      %s104 = sphi 0, %s103
      %s118 = sphi 0, %s104
      %s122 = sphi 0, %s122
      %s124 = sphi 0, %s122
      %s125 = sphi 0, %s124
      %s139 = sphi 0, %s125
      %s145 = sphi 0, %s147
      %s148 = sphi 0, %s145
      %s149 = sphi 0, %s148
      %s165 = sphi 0, %s149
    $region4: #{tpu_custom_call.1} parent=1 // loop_header_branch
      %18 = sbr.rel (%p16) target = $region8
    $region5: #{tpu_custom_call.1} parent=1 // loop_body
      %s20 = ssub.s32 %s15, 1
      %s21 = ssub.s32 %s15, 2
      %s22 = sadd.s32 %s15, 1
      %s23 = ssub.s32 %s15, %s22
      %p24 = scmp.eq.s32.totalorder %s23, 0
      %s26 = sadd.s32 %s25, 1
      %s27 = scalar_select %p24, %s25, %s26
      %p30 = pneg %p24
      %p31 = scmp.eq.s32.totalorder %s15, 1
      %p32 = por %p30, %p31
      %p33 = scmp.ne.s32.totalorder %s25, %s28
      %p34 = scmp.eq.s32.totalorder %s15, 0
      %p35 = por %p33, %p34
      %p36 = scmp.ne.s32.totalorder %s25, %s28
      %p37 = scmp.eq.s32.totalorder %s20, 1
      %p38 = por %p36, %p37
      %p39 = scmp.ne.s32.totalorder %s28, %s29
      %p40 = scmp.eq.s32.totalorder %s20, 0
      %p41 = por %p39, %p40
      %p42 = scmp.ne.s32.totalorder %s28, %s29
      %p43 = scmp.eq.s32.totalorder %s21, 1
      %p44 = por %p42, %p43
      %p46 = scmp.ne.s32.totalorder %s29, %s45
      %p47 = scmp.eq.s32.totalorder %s21, 0
      %p48 = por %p46, %p47
      %s49 = ssub.s32 %s15, %s22
      %p50 = scmp.eq.s32.totalorder %s49, 0
      %s52 = sadd.s32 %s51, 1
      %s53 = scalar_select %p50, %s51, %s52
      %p56 = pneg %p50
      %p57 = scmp.eq.s32.totalorder %s15, 1
      %p58 = por %p56, %p57
      %p59 = scmp.ne.s32.totalorder %s51, %s54
      %p60 = scmp.eq.s32.totalorder %s15, 0
      %p61 = por %p59, %p60
      %p62 = scmp.ne.s32.totalorder %s51, %s54
      %p63 = scmp.eq.s32.totalorder %s20, 1
      %p64 = por %p62, %p63
      %p65 = scmp.ne.s32.totalorder %s54, %s55
      %p66 = scmp.eq.s32.totalorder %s20, 0
      %p67 = por %p65, %p66
      %p68 = scmp.ne.s32.totalorder %s54, %s55
      %p69 = scmp.eq.s32.totalorder %s21, 1
      %p70 = por %p68, %p69
      %p72 = scmp.ne.s32.totalorder %s55, %s71
      %p73 = scmp.eq.s32.totalorder %s21, 0
      %p74 = por %p72, %p73
      %s75 = ssub.s32 %s15, %s22
      %p76 = scmp.eq.s32.totalorder %s75, 0
      %s78 = sadd.s32 %s77, 1
      %s79 = scalar_select %p76, %s77, %s78
      %p82 = pneg %p76
      %p83 = scmp.eq.s32.totalorder %s15, 1
      %p84 = por %p82, %p83
      %p85 = scmp.ne.s32.totalorder %s77, %s80
      %p86 = scmp.eq.s32.totalorder %s15, 0
      %p87 = por %p85, %p86
      %p88 = scmp.ne.s32.totalorder %s77, %s80
      %p89 = scmp.eq.s32.totalorder %s20, 1
      %p90 = por %p88, %p89
      %p91 = scmp.ne.s32.totalorder %s80, %s81
      %p92 = scmp.eq.s32.totalorder %s20, 0
      %p93 = por %p91, %p92
      %p94 = scmp.ne.s32.totalorder %s80, %s81
      %p95 = scmp.eq.s32.totalorder %s21, 1
      %p96 = por %p94, %p95
      %p98 = scmp.ne.s32.totalorder %s81, %s97
      %p99 = scmp.eq.s32.totalorder %s21, 0
      %p100 = por %p98, %p99
      %s102 = sadd.s32 %s101, 1
      %p105 = scmp.eq.s32.totalorder %s15, 1
      %p106 = scmp.ne.s32.totalorder %s101, %s103
      %p107 = scmp.eq.s32.totalorder %s15, 0
      %p108 = por %p106, %p107
      %p109 = scmp.ne.s32.totalorder %s101, %s103
      %p110 = scmp.eq.s32.totalorder %s20, 1
      %p111 = por %p109, %p110
      %p112 = scmp.ne.s32.totalorder %s103, %s104
      %p113 = scmp.eq.s32.totalorder %s20, 0
      %p114 = por %p112, %p113
      %p115 = scmp.ne.s32.totalorder %s103, %s104
      %p116 = scmp.eq.s32.totalorder %s21, 1
      %p117 = por %p115, %p116
      %p119 = scmp.ne.s32.totalorder %s104, %s118
      %p120 = scmp.eq.s32.totalorder %s21, 0
      %p121 = por %p119, %p120
      %s123 = sadd.s32 %s122, 1
      %p126 = scmp.eq.s32.totalorder %s15, 1
      %p127 = scmp.ne.s32.totalorder %s122, %s124
      %p128 = scmp.eq.s32.totalorder %s15, 0
      %p129 = por %p127, %p128
      %p130 = scmp.ne.s32.totalorder %s122, %s124
      %p131 = scmp.eq.s32.totalorder %s20, 1
      %p132 = por %p130, %p131
      %p133 = scmp.ne.s32.totalorder %s124, %s125
      %p134 = scmp.eq.s32.totalorder %s20, 0
      %p135 = por %p133, %p134
      %p136 = scmp.ne.s32.totalorder %s124, %s125
      %p137 = scmp.eq.s32.totalorder %s21, 1
      %p138 = por %p136, %p137
      %p140 = scmp.ne.s32.totalorder %s125, %s139
      %p141 = scmp.eq.s32.totalorder %s21, 0
      %p142 = por %p140, %p141
      %s143 = ssub.s32 %s15, %s22
      %p144 = scmp.eq.s32.totalorder %s143, 0
      %s146 = sadd.s32 %s145, 1
      %s147 = scalar_select %p144, %s145, %s146
      %p150 = pneg %p144
      %p151 = scmp.eq.s32.totalorder %s15, 1
      %p152 = por %p150, %p151
      %p153 = scmp.ne.s32.totalorder %s145, %s148
      %p154 = scmp.eq.s32.totalorder %s15, 0
      %p155 = por %p153, %p154
      %p156 = scmp.ne.s32.totalorder %s145, %s148
      %p157 = scmp.eq.s32.totalorder %s20, 1
      %p158 = por %p156, %p157
      %p159 = scmp.ne.s32.totalorder %s148, %s149
      %p160 = scmp.eq.s32.totalorder %s20, 0
      %p161 = por %p159, %p160
      %p162 = scmp.ne.s32.totalorder %s148, %s149
      %p163 = scmp.eq.s32.totalorder %s21, 1
      %p164 = por %p162, %p163
      %p166 = scmp.ne.s32.totalorder %s149, %s165
      %p167 = scmp.eq.s32.totalorder %s21, 0
      %p168 = por %p166, %p167
      %p169 = scmp.le.s32.totalorder 1, %s15
      %p170 = scmp.lt.s32.totalorder %s15, 3
      %p171 = pnand %p169, %p170
      %p172 = pneg %p171
      // Predicated region
      $region9: #{tpu_custom_call.1} parent=5 // pred_check
        _
      $region10: #{tpu_custom_call.1} parent=5 // pred_check_branch
        %174 = sbr.rel (%p171) target = $region12
      $region11: #{tpu_custom_call.1} parent=5 // pred_region
        %s175 = ssub.s32 %s15, 1
        // Predicated region
        $region13: #{tpu_custom_call.1} parent=11 // pred_check
          %p176 = pneg %p114
        $region14: #{tpu_custom_call.1} parent=11 // pred_check_branch
          %178 = sbr.rel (%p176) target = $region16
        $region15: #{tpu_custom_call.1} parent=11 // pred_region
          %s180 = ssub.s32 256, 256
          %181 = vsyncadd [#allocation3], %s180
          %s182 = sshll.u32 [#allocation2], 4
          %s183 = int_to_ptr.vmem [resolvable:$true] %s182
          %188 = dma.hbm_to_vmem [thread:$0]  %s3, 256, %s183, [#allocation3], 64, 64, 4
        $region16: #{tpu_custom_call.1} parent=11 // pred_fallthru
          _
        // Predicated region
        $region17: #{tpu_custom_call.1} parent=11 // pred_check
          %p189 = pneg %p135
        $region18: #{tpu_custom_call.1} parent=11 // pred_check_branch
          %191 = sbr.rel (%p189) target = $region20
        $region19: #{tpu_custom_call.1} parent=11 // pred_region
          _
        $region20: #{tpu_custom_call.1} parent=11 // pred_fallthru
          _
      $region12: #{tpu_custom_call.1} parent=5 // pred_fallthru
        _
      %p192 = scmp.lt.s32.totalorder %s15, 2
      // Predicated region
      $region21: #{tpu_custom_call.1} parent=5 // pred_check
        %p193 = pneg %p192
      $region22: #{tpu_custom_call.1} parent=5 // pred_check_branch
        %195 = sbr.rel (%p193) target = $region24
      $region23: #{tpu_custom_call.1} parent=5 // pred_region
        // Predicated region
        $region25: #{tpu_custom_call.1} parent=23 // pred_check
          %p196 = pneg %p35
        $region26: #{tpu_custom_call.1} parent=23 // pred_check_branch
          %198 = sbr.rel (%p196) target = $region28
        $region27: #{tpu_custom_call.1} parent=23 // pred_region
          %s199 = smul.u32 2, %s15
          %p200 = scmp.lt.s32.totalorder %s199, 3
          %s201 = scalar_select %p200, %s199, 3
          %s202 = smul.addr %s201, 2
          %s203 = smul.addr %s202, 4
          %s204 = scalar_lea.vmem %s0, %s203
          %s205 = smul.u32 2, %s15
        $region28: #{tpu_custom_call.1} parent=23 // pred_fallthru
          _
        // Predicated region
        $region29: #{tpu_custom_call.1} parent=23 // pred_check
          %p206 = pneg %p61
        $region30: #{tpu_custom_call.1} parent=23 // pred_check_branch
          %208 = sbr.rel (%p206) target = $region32
        $region31: #{tpu_custom_call.1} parent=23 // pred_region
          %s209 = smul.u32 2, %s15
          %p210 = scmp.lt.s32.totalorder %s209, 3
          %s211 = scalar_select %p210, %s209, 3
          %s212 = smul.addr %s211, 2
          %s213 = smul.addr %s212, 4
          %s214 = scalar_lea.vmem %s1, %s213
          %s215 = smul.u32 2, %s15
        $region32: #{tpu_custom_call.1} parent=23 // pred_fallthru
          _
        // Predicated region
        $region33: #{tpu_custom_call.1} parent=23 // pred_check
          %p216 = pneg %p87
        $region34: #{tpu_custom_call.1} parent=23 // pred_check_branch
          %218 = sbr.rel (%p216) target = $region36
        $region35: #{tpu_custom_call.1} parent=23 // pred_region
          %s219 = smul.u32 2, %s15
          %p220 = scmp.lt.s32.totalorder %s219, 3
          %s221 = scalar_select %p220, %s219, 3
          %s222 = smul.addr %s221, 2
          %s223 = smul.addr %s222, 8
          %s224 = scalar_lea.vmem %s2, %s223
          %s225 = smul.u32 2, %s15
        $region36: #{tpu_custom_call.1} parent=23 // pred_fallthru
          _
      $region24: #{tpu_custom_call.1} parent=5 // pred_fallthru
        _
      %p226 = scmp.le.s32.totalorder 1, %s15
      %p227 = scmp.lt.s32.totalorder %s15, 3
      %p228 = pnand %p226, %p227
      %p229 = pneg %p228
      // Predicated region
      $region37: #{tpu_custom_call.1} parent=5 // pred_check
        _
      $region38: #{tpu_custom_call.1} parent=5 // pred_check_branch
        %231 = sbr.rel (%p228) target = $region40
      $region39: #{tpu_custom_call.1} parent=5 // pred_region
        %s232 = ssub.s32 %s15, 1
        // Predicated region
        $region41: #{tpu_custom_call.1} parent=39 // pred_check
          %p233 = pneg %p114
        $region42: #{tpu_custom_call.1} parent=39 // pred_check_branch
          %235 = sbr.rel (%p233) target = $region44
        $region43: #{tpu_custom_call.1} parent=39 // pred_region
          %236 = dma.done [#allocation3], 256
        $region44: #{tpu_custom_call.1} parent=39 // pred_fallthru
          _
        %s237 = smul.u32 2, %s20
        %p238 = scmp.lt.s32.totalorder %s237, 3
        %s239 = scalar_select %p238, %s237, 3
        %s240 = smul.addr %s239, 2
        %s241 = smul.addr %s240, 4
        %s242 = scalar_lea.vmem %s0, %s241
        %p243 = pneg %p41
        %p244 = pneg %p38
        %s245 = smul.u32 2, %s20
        %p246 = scmp.lt.s32.totalorder %s245, 3
        %s247 = scalar_select %p246, %s245, 3
        %s248 = smul.addr %s247, 2
        %s249 = smul.addr %s248, 4
        %s250 = scalar_lea.vmem %s1, %s249
        %p251 = pneg %p67
        %p252 = pneg %p64
        %s253 = smul.u32 2, %s20
        %p254 = scmp.lt.s32.totalorder %s253, 3
        %s255 = scalar_select %p254, %s253, 3
        %s256 = smul.addr %s255, 2
        %s257 = smul.addr %s256, 8
        %s258 = scalar_lea.vmem %s2, %s257
        %p259 = pneg %p93
        %p260 = pneg %p90
        %p261 = pneg %p114
        %p262 = pneg %p111
        %p263 = pneg %p135
        %p264 = pneg %p132
        %p265 = pneg %p161
        %p266 = pneg %p158
        %s267 = sand.u32 %s148, 1
        %s268 = scalar_lea.sflag [#allocation4], %s267
        %s269 = sand.u32 %s148, 1
        %s270 = smul.addr %s269, 32
        %s271 = scalar_lea.vmem [#allocation5], %s270
        %s272 = smul.u32 2, %s20
        %p273 = scmp.lt.s32.totalorder %s272, 3
        %s274 = scalar_select %p273, %s272, 3
        %s275 = smul.addr %s274, 2
        %s276 = smul.addr %s275, 4
        %s277 = scalar_lea.vmem %s0, %s276
        %s278 = smul.u32 2, %s20
        %s279 = smul.u32 2, %s20
        %p280 = scmp.lt.s32.totalorder %s279, 3
        %s281 = scalar_select %p280, %s279, 3
        %s282 = smul.addr %s281, 2
        %s283 = smul.addr %s282, 4
        %s284 = scalar_lea.vmem %s1, %s283
        %s285 = smul.u32 2, %s20
        %s286 = smul.u32 2, %s20
        %p287 = scmp.lt.s32.totalorder %s286, 3
        %s288 = scalar_select %p287, %s286, 3
        %s289 = smul.addr %s288, 2
        %s290 = smul.addr %s289, 8
        %s291 = scalar_lea.vmem %s2, %s290
        %s292 = smul.u32 2, %s20
        %s293 = smul.u32 2, %s20
        %v295 = vld [vmem:[%s284] sm:$0xf]
        %v296 = vld [vmem:[%s284 + $0x4] sm:$0xf]
        %v297 = vld [vmem:[%s284 + $0x8] sm:$0xf]
        %v298 = vld [vmem:[%s284 + $0xc] sm:$0xf]
        %v299 = vld [vmem:[#allocation2] sm:$0xf]
        %v300 = vld [vmem:[#allocation2 + $0x4] sm:$0xf]
        %v301 = vld [vmem:[#allocation2 + $0x8] sm:$0xf]
        %v302 = vld [vmem:[#allocation2 + $0xc] sm:$0xf]
        %v307 = vunpack.c.l.b16 %v295
        %v308 = vunpack.c.l.b16 %v296
        %v309 = vunpack.c.l.b16 %v297
        %v310 = vunpack.c.l.b16 %v298
        %v311 = vpack.c.b16 %v308, %v307
        %v312 = vpack.c.b16 %v310, %v309
        %v317 = vunpack.c.l.b16 %v299
        %v318 = vunpack.c.l.b16 %v300
        %v319 = vunpack.c.l.b16 %v301
        %v320 = vunpack.c.l.b16 %v302
        %v321 = vpack.c.b16 %v318, %v317
        %v322 = vpack.c.b16 %v320, %v319
        %vm325 = vcmask 261120
        %v327 = vsel %vm325, %v311, 0
        %v330 = vsel %vm325, %v312, 0
        %332 = vmatprep.subr.bf16.mxu0 0
        %333 = vmatpush1.bf16.msra.mxu0 %v321
        %334 = vmatprep.subr.bf16.mxu0 0
        %335 = vmatpush1.bf16.msra.mxu0 %v322
        %336 = vmatprep.subr.bf16.mxu0 0
        %337 = vmatpush1.bf16.msra.mxu0 0
        %338 = vmatprep.subr.bf16.mxu0 0
        %339 = vmatpush1.bf16.msra.mxu0 0
        %340 = vmatprep.subr.bf16.mxu0 0
        %341 = vmatpush1.bf16.msra.mxu0 0
        %342 = vmatprep.subr.bf16.mxu0 0
        %343 = vmatpush1.bf16.msra.mxu0 0
        %344 = vmatprep.subr.bf16.mxu0 0
        %345 = vmatpush1.bf16.msra.mxu0 0
        %346 = vmatprep.subr.bf16.mxu0 0
        %347 = vmatpush1.bf16.msra.mxu0 0
        %348 = vmatprep.subr.bf16.mxu0 0
        %349 = vmatpush1.bf16.msra.mxu0 0
        %350 = vmatprep.subr.bf16.mxu0 0
        %351 = vmatpush1.bf16.msra.mxu0 0
        %352 = vmatprep.subr.bf16.mxu0 0
        %353 = vmatpush1.bf16.msra.mxu0 0
        %354 = vmatprep.subr.bf16.mxu0 0
        %355 = vmatpush1.bf16.msra.mxu0 0
        %356 = vmatprep.subr.bf16.mxu0 0
        %357 = vmatpush1.bf16.msra.mxu0 0
        %358 = vmatprep.subr.bf16.mxu0 0
        %359 = vmatpush1.bf16.msra.mxu0 0
        %360 = vmatprep.subr.bf16.mxu0 0
        %361 = vmatpush1.bf16.msra.mxu0 0
        %362 = vmatprep.subr.bf16.mxu0 0
        %363 = vmatpush1.bf16.msra.mxu0 0
        %364 = vmatprep.mubr.bf16.mxu0 0
        %365 = vmatmul.mubr.bf16.gmra.mrb[0].mxu0 %v327
        %v366 = vpop.f32.mrb[0].mxu0
        %v367 = vadd.f32 0.0, %v366
        %v368 = vpop.f32.mrb[0].mxu0
        %v369 = vpop.f32.mrb[0].mxu0
        %v370 = vadd.f32 0.0, %v369
        %v371 = vpop.f32.mrb[0].mxu0
        %372 = vmatprep.mubr.bf16.mxu0 0
        %373 = vmatmul.mubr.bf16.gmra.mrb[0].mxu0 %v330
        %v374 = vpop.f32.mrb[0].mxu0
        %v375 = vadd.f32 0.0, %v374
        %v376 = vpop.f32.mrb[0].mxu0
        %v377 = vpop.f32.mrb[0].mxu0
        %v378 = vadd.f32 0.0, %v377
        %v379 = vpop.f32.mrb[0].mxu0
        %380 = vdwg.mxu0
        %v381 = vld [vmem:[%s291] sm:$0xff]
        %v382 = vld [vmem:[%s291 + $0x8] sm:$0xff]
        %v383 = vld [vmem:[%s291 + $0x10] sm:$0xff]
        %v384 = vld [vmem:[%s291 + $0x18] sm:$0xff]
        %386 = vset.pattern.permute.xlu0 0
        %387 = vperm.xlu0 %386, %v381
        %v388 = vpop.permute.xlu0 %387
        %391 = vset.pattern.permute.xlu0 0
        %392 = vperm.xlu0 %391, %v382
        %v393 = vpop.permute.xlu0 %392
        %396 = vset.pattern.permute.xlu0 0
        %397 = vperm.xlu0 %396, %v383
        %v398 = vpop.permute.xlu0 %397
        %401 = vset.pattern.permute.xlu0 0
        %402 = vperm.xlu0 %401, %v384
        %v403 = vpop.permute.xlu0 %402
        %v405 = vmul.f32 %v388, %v367
        %v406 = vmul.f32 %v393, %v370
        %v407 = vmul.f32 %v398, %v375
        %v408 = vmul.f32 %v403, %v378
        %v409 = vld [vmem:[%s277] sm:$0xf]
        %v410 = vld [vmem:[%s277 + $0x4] sm:$0xf]
        %v411 = vld [vmem:[%s277 + $0x8] sm:$0xf]
        %v412 = vld [vmem:[%s277 + $0xc] sm:$0xf]
        %v413 = vpack.c.bf16 %v406, %v405
        %v414 = vpack.c.bf16 %v408, %v407
        %v417 = vunpack.c.l.b16 %v409
        %v418 = vunpack.c.l.b16 %v410
        %v419 = vpack.c.b16 %v418, %v417
        %vm420 = vcmask 130048
        %v422 = vsel %vm420, %v419, 0
        %424 = vmatprep.subr.bf16.mxu0 0
        %425 = vmatpush1.bf16.msra.mxu0 %v413
        %426 = vmatprep.subr.bf16.mxu0 0
        %427 = vmatpush1.bf16.msra.mxu0 0
        %428 = vmatprep.subr.bf16.mxu0 0
        %429 = vmatpush1.bf16.msra.mxu0 0
        %430 = vmatprep.subr.bf16.mxu0 0
        %431 = vmatpush1.bf16.msra.mxu0 0
        %432 = vmatprep.subr.bf16.mxu0 0
        %433 = vmatpush1.bf16.msra.mxu0 0
        %434 = vmatprep.subr.bf16.mxu0 0
        %435 = vmatpush1.bf16.msra.mxu0 0
        %436 = vmatprep.subr.bf16.mxu0 0
        %437 = vmatpush1.bf16.msra.mxu0 0
        %438 = vmatprep.subr.bf16.mxu0 0
        %439 = vmatpush1.bf16.msra.mxu0 0
        %440 = vmatprep.subr.bf16.mxu0 0
        %441 = vmatpush1.bf16.msra.mxu0 0
        %442 = vmatprep.subr.bf16.mxu0 0
        %443 = vmatpush1.bf16.msra.mxu0 0
        %444 = vmatprep.subr.bf16.mxu0 0
        %445 = vmatpush1.bf16.msra.mxu0 0
        %446 = vmatprep.subr.bf16.mxu0 0
        %447 = vmatpush1.bf16.msra.mxu0 0
        %448 = vmatprep.subr.bf16.mxu0 0
        %449 = vmatpush1.bf16.msra.mxu0 0
        %450 = vmatprep.subr.bf16.mxu0 0
        %451 = vmatpush1.bf16.msra.mxu0 0
        %452 = vmatprep.subr.bf16.mxu0 0
        %453 = vmatpush1.bf16.msra.mxu0 0
        %454 = vmatprep.subr.bf16.mxu0 0
        %455 = vmatpush1.bf16.msra.mxu0 0
        %456 = vmatprep.mubr.bf16.mxu0 0
        %457 = vmatmul.mubr.bf16.gmra.mrb[0].mxu0 %v422
        %v458 = vpop.f32.mrb[0].mxu0
        %v459 = vadd.f32 %v405, %v458
        %v460 = vpop.f32.mrb[0].mxu0
        %v461 = vpop.f32.mrb[0].mxu0
        %v462 = vadd.f32 %v406, %v461
        %v463 = vpop.f32.mrb[0].mxu0
        %464 = vdwg.mxu0
        %v467 = vunpack.c.l.b16 %v411
        %v468 = vunpack.c.l.b16 %v412
        %v469 = vpack.c.b16 %v468, %v467
        %v471 = vsel %vm420, %v469, 0
        %473 = vmatprep.subr.bf16.mxu0 0
        %474 = vmatpush1.bf16.msra.mxu0 %v414
        %475 = vmatprep.subr.bf16.mxu0 0
        %476 = vmatpush1.bf16.msra.mxu0 0
        %477 = vmatprep.subr.bf16.mxu0 0
        %478 = vmatpush1.bf16.msra.mxu0 0
        %479 = vmatprep.subr.bf16.mxu0 0
        %480 = vmatpush1.bf16.msra.mxu0 0
        %481 = vmatprep.subr.bf16.mxu0 0
        %482 = vmatpush1.bf16.msra.mxu0 0
        %483 = vmatprep.subr.bf16.mxu0 0
        %484 = vmatpush1.bf16.msra.mxu0 0
        %485 = vmatprep.subr.bf16.mxu0 0
        %486 = vmatpush1.bf16.msra.mxu0 0
        %487 = vmatprep.subr.bf16.mxu0 0
        %488 = vmatpush1.bf16.msra.mxu0 0
        %489 = vmatprep.subr.bf16.mxu0 0
        %490 = vmatpush1.bf16.msra.mxu0 0
        %491 = vmatprep.subr.bf16.mxu0 0
        %492 = vmatpush1.bf16.msra.mxu0 0
        %493 = vmatprep.subr.bf16.mxu0 0
        %494 = vmatpush1.bf16.msra.mxu0 0
        %495 = vmatprep.subr.bf16.mxu0 0
        %496 = vmatpush1.bf16.msra.mxu0 0
        %497 = vmatprep.subr.bf16.mxu0 0
        %498 = vmatpush1.bf16.msra.mxu0 0
        %499 = vmatprep.subr.bf16.mxu0 0
        %500 = vmatpush1.bf16.msra.mxu0 0
        %501 = vmatprep.subr.bf16.mxu0 0
        %502 = vmatpush1.bf16.msra.mxu0 0
        %503 = vmatprep.subr.bf16.mxu0 0
        %504 = vmatpush1.bf16.msra.mxu0 0
        %505 = vmatprep.mubr.bf16.mxu0 0
        %506 = vmatmul.mubr.bf16.gmra.mrb[0].mxu0 %v471
        %v507 = vpop.f32.mrb[0].mxu0
        %v508 = vadd.f32 %v407, %v507
        %v509 = vpop.f32.mrb[0].mxu0
        %v510 = vpop.f32.mrb[0].mxu0
        %v511 = vadd.f32 %v408, %v510
        %v512 = vpop.f32.mrb[0].mxu0
        %513 = vdwg.mxu0
        %v514 = vmul.f32 %v388, %v459
        %v515 = vmul.f32 %v393, %v462
        %v516 = vmul.f32 %v398, %v508
        %v517 = vmul.f32 %v403, %v511
        %v518 = vld [vmem:[%s4] sm:$0x1]
        %v520 = vlaneseq
        %v521 = vshrl.u32 %v520, 7
        %v522 = vsub.s32 0, %v521
        %v523 = vrot.slane %v518, %v522
        %v525 = vadd.f32 %v514, %v523
        %v526 = vadd.f32 %v515, %v523
        %v527 = vadd.f32 %v516, %v523
        %v528 = vadd.f32 %v517, %v523
        %v529 = vmax.f32 %v525, 0.0
        %v530 = vmax.f32 %v526, 0.0
        %v531 = vmax.f32 %v527, 0.0
        %v532 = vmax.f32 %v528, 0.0
        %533 = vst [vmem:[%s271] sm:$0xff] %v529
        %534 = vst [vmem:[%s271 + $0x8] sm:$0xff] %v530
        %535 = vst [vmem:[%s271 + $0x10] sm:$0xff] %v531
        %536 = vst [vmem:[%s271 + $0x18] sm:$0xff] %v532
        %s537 = sand.u32 %s148, 1
        %s538 = scalar_lea.sflag [#allocation4], %s537
        %s539 = sand.u32 %s148, 1
        %s540 = smul.addr %s539, 32
        %s541 = scalar_lea.vmem [#allocation5], %s540
        // Predicated region
        $region45: #{tpu_custom_call.1} parent=39 // pred_check
          %p542 = pneg %p158
        $region46: #{tpu_custom_call.1} parent=39 // pred_check_branch
          %544 = sbr.rel (%p542) target = $region48
        $region47: #{tpu_custom_call.1} parent=39 // pred_region
          %s545 = smul.u32 2, %s20
          %s547 = ssub.s32 512, 512
          %548 = vsyncadd %s538, %s547
          %s549 = smul.addr %s545, 2
          %s550 = smul.addr %s549, 128
          %s551 = scalar_lea.hbm %s5, %s550
          %s552 = sshll.u32 %s541, 4
          %s553 = int_to_ptr.vmem [resolvable:$true] %s552
          %558 = dma.vmem_to_hbm [thread:$0]  %s553, 512, %s551, %s538, 128, 128, 8
        $region48: #{tpu_custom_call.1} parent=39 // pred_fallthru
          _
      $region40: #{tpu_custom_call.1} parent=5 // pred_fallthru
        _
      %p559 = scmp.le.s32.totalorder 2, %s15
      // Predicated region
      $region49: #{tpu_custom_call.1} parent=5 // pred_check
        %p560 = pneg %p559
      $region50: #{tpu_custom_call.1} parent=5 // pred_check_branch
        %562 = sbr.rel (%p560) target = $region52
      $region51: #{tpu_custom_call.1} parent=5 // pred_region
        %s563 = ssub.s32 %s15, 2
        // Predicated region
        $region53: #{tpu_custom_call.1} parent=51 // pred_check
          %p564 = pneg %p164
        $region54: #{tpu_custom_call.1} parent=51 // pred_check_branch
          %566 = sbr.rel (%p564) target = $region56
        $region55: #{tpu_custom_call.1} parent=51 // pred_region
          %s567 = sand.u32 %s149, 1
          %s568 = scalar_lea.sflag [#allocation4], %s567
          %s569 = sand.u32 %s149, 1
          %s570 = smul.addr %s569, 32
          %s571 = scalar_lea.vmem [#allocation5], %s570
          %572 = dma.done %s568, 512
        $region56: #{tpu_custom_call.1} parent=51 // pred_fallthru
          _
      $region52: #{tpu_custom_call.1} parent=5 // pred_fallthru
        _
    $region6: #{tpu_custom_call.1} parent=1 // loop_footer
      %s19 = sadd.s32 1, %s15
    $region7: #{tpu_custom_call.1} parent=1 // loop_footer_branch
      %14 = sbr.rel target = $region3
    $region8: #{tpu_custom_call.1} parent=1 // loop_exit
      _
    %573 = vsyncpa [#allocation3], 1
    %s574 = scalar_lea.sflag [#allocation3], 1
    %575 = vsyncpa %s574, 1
    %576 = vsyncpa [#allocation4], 1
    %s577 = scalar_lea.sflag [#allocation4], 1
    %578 = vsyncpa %s577, 1

</llo_original>
